<compile_context>
chip_gen: v7x
topology: tpu7x:2x2x1
jax: 0.10.0
libtpu: 0.0.40
codegen_flags: <defaults>
</compile_context>

<pallas_src>
import jax
import jax.numpy as jnp
from jax import lax
from jax.experimental import pallas as pl
from jax.experimental.pallas import tpu as pltpu


def _round_up(n, m):
    return ((n + m - 1) // m) * m


def mlp_kernel(x_ref, w1_ref, b1_ref, w2_ref, b2_ref, w3_ref, b3_ref, o_ref):
    # x tile: (tile, F) bf16 -> promoted to f32 inside the dot.
    x = x_ref[...]

    # Layer 1: Linear(F -> h0) + ReLU (f32 accumulate / f32 elementwise).
    h = jnp.dot(x, w1_ref[...], preferred_element_type=jnp.float32)
    h = jnp.maximum(h + b1_ref[...], 0.0)

    # Layer 2: Linear(h0 -> h1) + ReLU.
    h = jnp.dot(h, w2_ref[...], preferred_element_type=jnp.float32)
    h = jnp.maximum(h + b2_ref[...], 0.0)

    # Layer 3: Linear(h1 -> h2), computed transposed so the result is
    # (h2, tile): batch lands on the lane axis -> lane-dense output store.
    # w3 is kept in PyTorch layout (h2, h1); contract both on the hidden axis.
    z = lax.dot_general(
        w3_ref[...], h,
        dimension_numbers=(((1,), (1,)), ((), ())),
        preferred_element_type=jnp.float32,
    )                                     # (h2, tile)
    z = z + b3_ref[...]                   # b3 is (h2, 1): broadcast over lanes

    # Sigmoid: exp on the EUP, divide replaced by EUP approximate reciprocal.
    sig = pl.reciprocal(1.0 + jnp.exp(-z), approx=True)
    o_ref[...] = sig.astype(o_ref.dtype)


def fully_connected_layer(x, params, *, batch_tile=512):
    """Forward pass of FullyConnectedLayer(input_size, [h0, h1, h2], relu, sigmoid=True).

    params: dict with PyTorch-convention weights w_i: [out, in], b_i: [out].
    """
    B, F = x.shape

    # Layers 1/2 get pre-transposed ([in, out]) weights; layer 3 stays in
    # PyTorch layout because the kernel contracts it transposed on purpose.
    w1 = params["w1"].T.astype(jnp.float32)        # (F,  h0)
    w2 = params["w2"].T.astype(jnp.float32)        # (h0, h1)
    w3 = params["w3"].astype(jnp.float32)          # (h2, h1)
    b1 = params["b1"].reshape(1, -1).astype(jnp.float32)   # (1, h0)
    b2 = params["b2"].reshape(1, -1).astype(jnp.float32)   # (1, h1)
    b3 = params["b3"].reshape(-1, 1).astype(jnp.float32)   # (h2, 1)

    h0, h1, h2 = w1.shape[1], w2.shape[1], w3.shape[0]

    # bf16 only for the dominant HBM stream (x); weights/biases are tiny.
    x_bf = x.astype(jnp.bfloat16)

    # Batch tiling: large default tile (amortizes per-step overhead, fills MXU
    # rows), clamped + padded so any batch size works. Tile stays a multiple
    # of 8 (sublane constraint).
    tile = max(8, min(batch_tile, _round_up(B, 8)))
    tile = _round_up(tile, 8)
    B_pad = _round_up(B, tile)
    if B_pad != B:
        x_bf = jnp.pad(x_bf, ((0, B_pad - B), (0, 0)))
    n_tiles = B_pad // tile

    # Advisory cost hint: memory-bound, tiny flops, B*h2 transcendentals.
    cost = pl.CostEstimate(
        flops=2 * B_pad * (F * h0 + h0 * h1 + h1 * h2),
        transcendentals=2 * B_pad * h2,
        bytes_accessed=(x_bf.size * 2 + B_pad * h2 * 4
                        + (w1.size + w2.size + w3.size + h0 + h1 + h2) * 4),
    )

    full = lambda shape: pl.BlockSpec(shape, lambda i: (0, 0))

    out_t = pl.pallas_call(
        mlp_kernel,
        out_shape=jax.ShapeDtypeStruct((n_tiles, h2, tile), jnp.float32),
        grid_spec=pl.GridSpec(
            grid=(n_tiles,),
            in_specs=[
                pl.BlockSpec((tile, F), lambda i: (i, 0)),   # x batch tile
                full((F, h0)),                               # w1 (resident)
                full((1, h0)),                               # b1
                full((h0, h1)),                              # w2
                full((1, h1)),                               # b2
                full((h2, h1)),                              # w3 (PyTorch layout)
                full((h2, 1)),                               # b3 (column)
            ],
            # Lane-dense output tile: (h2, tile), batch on the lane axis.
            out_specs=pl.BlockSpec((None, h2, tile), lambda i: (i, 0, 0)),
        ),
        compiler_params=pltpu.CompilerParams(
            # On v7x this shards the batch grid across both TensorCores;
            # neutral on v5e/v6e. Default scoped VMEM (32 MiB) is ample for
            # tile <= 2048; set vmem_limit_bytes only for much larger tiles.
            dimension_semantics=("parallel",),
        ),
        cost_estimate=cost,
    )(x_bf, w1, b1, w2, b2, w3, b3)

    # (n_tiles, h2, tile) -> (B, h2): tiny un-transpose + trim padding.
    out = out_t.transpose(0, 2, 1).reshape(B_pad, h2)[:B]
    return out.astype(x.dtype)


def init_params(key, input_size, hidden_unit):
    """Deterministic init mimicking nn.Linear default (uniform +-1/sqrt(fan_in))."""
    params = {}
    dims = [input_size] + list(hidden_unit)
    for idx in range(len(hidden_unit)):
        fan_in, fan_out = dims[idx], dims[idx + 1]
        key, kw, kb = jax.random.split(key, 3)
        bound = 1.0 / jnp.sqrt(fan_in)
        # PyTorch convention: weight [out, in], bias [out]
        params[f"w{idx + 1}"] = jax.random.uniform(
            kw, (fan_out, fan_in), jnp.float32, -bound, bound
        )
        params[f"b{idx + 1}"] = jax.random.uniform(
            kb, (fan_out,), jnp.float32, -bound, bound
        )
    return params


def reference_forward(x, params):
    """Pure-JAX reference identical to the PyTorch module semantics."""
    h = x @ params["w1"].T + params["b1"]
    h = jnp.maximum(h, 0.0)
    h = h @ params["w2"].T + params["b2"]
    h = jnp.maximum(h, 0.0)
    h = h @ params["w3"].T + params["b3"]
    return jax.nn.sigmoid(h)


if __name__ == "__main__":
    input_size = 32
    hidden_unit = [64, 32, 1]
    batch = 8

    key = jax.random.PRNGKey(0)
    key, kx = jax.random.split(key)
    x = jax.random.normal(kx, (batch, input_size), jnp.float32)
    params = init_params(key, input_size, hidden_unit)

    out = fully_connected_layer(x, params)
    out = jax.block_until_ready(out)

    # Reference on the same bf16-rounded x the kernel streams; tolerance also
    # covers the EUP approximate reciprocal inside the sigmoid.
    x_ref_in = x.astype(jnp.bfloat16).astype(jnp.float32)
    ref = reference_forward(x_ref_in, params)

    assert out.shape == (batch, hidden_unit[-1])
    assert jnp.allclose(out, ref, atol=1e-2, rtol=1e-2)

    print("KERNEL_OK")
</pallas_src>

<mosaic_0001>
module attributes {stable_mosaic.version = 11 : i64} {
  func.func @mlp_kernel(%arg0: i32, %arg1: memref<8x32xbf16, #tpu.memory_space<vmem>>, %arg2: memref<32x64xf32, #tpu.memory_space<vmem>>, %arg3: memref<1x64xf32, #tpu.memory_space<vmem>>, %arg4: memref<64x32xf32, #tpu.memory_space<vmem>>, %arg5: memref<1x32xf32, #tpu.memory_space<vmem>>, %arg6: memref<1x32xf32, #tpu.memory_space<vmem>>, %arg7: memref<1x1xf32, #tpu.memory_space<vmem>>, %arg8: memref<1x1x8xf32, #tpu.memory_space<vmem>>) attributes {dimension_semantics = [#tpu.dimension_semantics<parallel>], iteration_bounds = array<i64: 1>, scalar_prefetch = 0 : i64, scratch_operands = 0 : i64, tpu.core_type = #tpu.core_type<tc>, window_params = [{transform_indices = @transform_0, window_bounds = array<i64: 8, 32>}, {pipeline_mode = #tpu.pipeline_mode<synchronous>, transform_indices = @transform_1, window_bounds = array<i64: 32, 64>}, {pipeline_mode = #tpu.pipeline_mode<synchronous>, transform_indices = @transform_2, window_bounds = array<i64: 1, 64>}, {pipeline_mode = #tpu.pipeline_mode<synchronous>, transform_indices = @transform_3, window_bounds = array<i64: 64, 32>}, {pipeline_mode = #tpu.pipeline_mode<synchronous>, transform_indices = @transform_4, window_bounds = array<i64: 1, 32>}, {pipeline_mode = #tpu.pipeline_mode<synchronous>, transform_indices = @transform_5, window_bounds = array<i64: 1, 32>}, {pipeline_mode = #tpu.pipeline_mode<synchronous>, transform_indices = @transform_6, window_bounds = array<i64: 1, 1>}, {transform_indices = @transform_7, window_bounds = array<i64: 1, 1, 8>}]} {
    %c0 = arith.constant 0 : index
    %c0_0 = arith.constant 0 : index
    %0 = vector.load %arg1[%c0, %c0_0] : memref<8x32xbf16, #tpu.memory_space<vmem>>, vector<8x32xbf16>
    %c0_1 = arith.constant 0 : index
    %c0_2 = arith.constant 0 : index
    %1 = vector.load %arg2[%c0_1, %c0_2] : memref<32x64xf32, #tpu.memory_space<vmem>>, vector<32x64xf32>
    %cst = arith.constant dense<0.000000e+00> : vector<8x64xf32>
    %2 = tpu.matmul %0, %1, %cst {dimension_numbers = #tpu.dot_dimension_numbers<[1], [0], [0], [1], [0, 0, 1, 1], [], []>} : vector<8x32xbf16>, vector<32x64xf32>, vector<8x64xf32> -> vector<8x64xf32>
    %c0_3 = arith.constant 0 : index
    %c0_4 = arith.constant 0 : index
    %3 = vector.load %arg3[%c0_3, %c0_4] : memref<1x64xf32, #tpu.memory_space<vmem>>, vector<1x64xf32>
    %4 = vector.broadcast %3 : vector<1x64xf32> to vector<8x64xf32>
    %5 = arith.addf %2, %4 : vector<8x64xf32>
    %cst_5 = arith.constant 0.000000e+00 : f32
    %6 = vector.broadcast %cst_5 : f32 to vector<8x64xf32>
    %7 = arith.maximumf %5, %6 : vector<8x64xf32>
    %c0_6 = arith.constant 0 : index
    %c0_7 = arith.constant 0 : index
    %8 = vector.load %arg4[%c0_6, %c0_7] : memref<64x32xf32, #tpu.memory_space<vmem>>, vector<64x32xf32>
    %cst_8 = arith.constant dense<0.000000e+00> : vector<8x32xf32>
    %9 = tpu.matmul %7, %8, %cst_8 {dimension_numbers = #tpu.dot_dimension_numbers<[1], [0], [0], [1], [0, 0, 1, 1], [], []>} : vector<8x64xf32>, vector<64x32xf32>, vector<8x32xf32> -> vector<8x32xf32>
    %c0_9 = arith.constant 0 : index
    %c0_10 = arith.constant 0 : index
    %10 = vector.load %arg5[%c0_9, %c0_10] : memref<1x32xf32, #tpu.memory_space<vmem>>, vector<1x32xf32>
    %11 = vector.broadcast %10 : vector<1x32xf32> to vector<8x32xf32>
    %12 = arith.addf %9, %11 : vector<8x32xf32>
    %cst_11 = arith.constant 0.000000e+00 : f32
    %13 = vector.broadcast %cst_11 : f32 to vector<8x32xf32>
    %14 = arith.maximumf %12, %13 : vector<8x32xf32>
    %c0_12 = arith.constant 0 : index
    %c0_13 = arith.constant 0 : index
    %15 = vector.load %arg6[%c0_12, %c0_13] : memref<1x32xf32, #tpu.memory_space<vmem>>, vector<1x32xf32>
    %cst_14 = arith.constant dense<0.000000e+00> : vector<1x8xf32>
    %16 = tpu.matmul %15, %14, %cst_14 {dimension_numbers = #tpu.dot_dimension_numbers<[1], [1], [0], [0], [0, 0, 1, 0], [], []>} : vector<1x32xf32>, vector<8x32xf32>, vector<1x8xf32> -> vector<1x8xf32>
    %c0_15 = arith.constant 0 : index
    %c0_16 = arith.constant 0 : index
    %17 = vector.load %arg7[%c0_15, %c0_16] : memref<1x1xf32, #tpu.memory_space<vmem>>, vector<1x1xf32>
    %18 = vector.broadcast %17 : vector<1x1xf32> to vector<1x8xf32>
    %19 = arith.addf %16, %18 : vector<1x8xf32>
    %cst_17 = arith.constant 0.000000e+00 : f32
    %20 = vector.broadcast %cst_17 : f32 to vector<1x8xf32>
    %21 = arith.subf %20, %19 : vector<1x8xf32>
    %22 = math.exp %21 : vector<1x8xf32>
    %cst_18 = arith.constant 1.000000e+00 : f32
    %23 = vector.broadcast %cst_18 : f32 to vector<1x8xf32>
    %24 = arith.addf %23, %22 : vector<1x8xf32>
    %25 = tpu.reciprocal %24 {approx = true} : vector<1x8xf32> -> vector<1x8xf32>
    %c0_19 = arith.constant 0 : index
    %c0_20 = arith.constant 0 : index
    %c0_21 = arith.constant 0 : index
    %26 = vector.load %arg8[%c0_19, %c0_20, %c0_21] : memref<1x1x8xf32, #tpu.memory_space<vmem>>, vector<1x1x8xf32>
    %27 = vector.shape_cast %26 : vector<1x1x8xf32> to vector<1x8xf32>
    %28 = vector.shape_cast %25 : vector<1x8xf32> to vector<1x1x8xf32>
    tpu.vector_store %arg8[%c0_19, %c0_20, %c0_21], %28 {strides = array<i32>} : memref<1x1x8xf32, #tpu.memory_space<vmem>>, vector<1x1x8xf32>,
    return
  }
  func.func @transform_0(%arg0: i32) -> (i32, i32) {
    %c0_i32 = arith.constant 0 : i32
    %c0_i32_0 = arith.constant 0 : i32
    return %arg0, %c0_i32 : i32, i32
  }
  func.func @transform_1(%arg0: i32) -> (i32, i32) {
    %c0_i32 = arith.constant 0 : i32
    %c0_i32_0 = arith.constant 0 : i32
    %c0_i32_1 = arith.constant 0 : i32
    return %c0_i32, %c0_i32_0 : i32, i32
  }
  func.func @transform_2(%arg0: i32) -> (i32, i32) {
    %c0_i32 = arith.constant 0 : i32
    %c0_i32_0 = arith.constant 0 : i32
    %c0_i32_1 = arith.constant 0 : i32
    return %c0_i32, %c0_i32_0 : i32, i32
  }
  func.func @transform_3(%arg0: i32) -> (i32, i32) {
    %c0_i32 = arith.constant 0 : i32
    %c0_i32_0 = arith.constant 0 : i32
    %c0_i32_1 = arith.constant 0 : i32
    return %c0_i32, %c0_i32_0 : i32, i32
  }
  func.func @transform_4(%arg0: i32) -> (i32, i32) {
    %c0_i32 = arith.constant 0 : i32
    %c0_i32_0 = arith.constant 0 : i32
    %c0_i32_1 = arith.constant 0 : i32
    return %c0_i32, %c0_i32_0 : i32, i32
  }
  func.func @transform_5(%arg0: i32) -> (i32, i32) {
    %c0_i32 = arith.constant 0 : i32
    %c0_i32_0 = arith.constant 0 : i32
    %c0_i32_1 = arith.constant 0 : i32
    return %c0_i32, %c0_i32_0 : i32, i32
  }
  func.func @transform_6(%arg0: i32) -> (i32, i32) {
    %c0_i32 = arith.constant 0 : i32
    %c0_i32_0 = arith.constant 0 : i32
    %c0_i32_1 = arith.constant 0 : i32
    return %c0_i32, %c0_i32_0 : i32, i32
  }
  func.func @transform_7(%arg0: i32) -> (i32, i32, i32) {
    %c0_i32 = arith.constant 0 : i32
    %c0_i32_0 = arith.constant 0 : i32
    %c0_i32_1 = arith.constant 0 : i32
    return %arg0, %c0_i32, %c0_i32_0 : i32, i32, i32
  }
}

</mosaic_0001>

<llo_original>
// kernel: tpu_custom_call.1
$region0: #{tpu_custom_call.1}
  #allocation0 [shape = 'u32[]', space=smem, size = 0x4, offset = 0x4, fixed_abs, tag = 'smem constant byte address 0x4 - core index']
  #allocation1 [shape = 'u32[144,128]{1,0:T(1,128)}', space=vmem, size = 0x12000, scoped, tag = 'internal scratch']
  #allocation2 [shape = 'f32[1,1]{1,0:T(1,128)S(1)}', space=vmem, size = 0x200, scoped, tag = 'scoped memory for tpu_custom_call.1']
  %s0 = inlined_call_operand.vmem [shape: bf16[8,32], index: 0, kind: input, shape index: {}]
  %s1 = inlined_call_operand.vmem [shape: f32[32,64], index: 1, kind: input, shape index: {}]
  %s2 = inlined_call_operand.vmem [shape: f32[1,64], index: 2, kind: input, shape index: {}]
  %s3 = inlined_call_operand.vmem [shape: f32[64,32], index: 3, kind: input, shape index: {}]
  %s4 = inlined_call_operand.vmem [shape: f32[1,32], index: 4, kind: input, shape index: {}]
  %s5 = inlined_call_operand.vmem [shape: f32[1,32], index: 5, kind: input, shape index: {}]
  %s6 = inlined_call_operand.<no memory space> [shape: f32[1,1], index: 6, kind: input, shape index: {}]
  %s7 = inlined_call_operand.hbm [shape: f32[1,1,8], index: 7, kind: output, shape index: {}]
  %s8 = sld [smem:[#allocation0]]
  $region38: #{tpu_custom_call.1} parent=0
    _
  %s10 = ssub.s32 1, %s8
  %s11 = scalar_select 0, %s10, %s8
  %v12 = vstv %s6
  %13 = vst [vmem:[#allocation2] sm:$0x1] %v12
  $region1: #{tpu_custom_call.1} parent=0
    #allocation3 [shape = 'u8[512]{0}', space=vmem, size = 0x400, scoped, tag = 'output window, operand 0, single buffered']
    #allocation4 [shape = 's32[1]{0}', space=sflag, size = 0x4, scoped, tag = 'scoped memory for tpu_custom_call.1']
    %14 = vsyncpa [#allocation4], 0
    // Predicated region
    $region2: #{tpu_custom_call.1} parent=1 // pred_check
      _
    $region3: #{tpu_custom_call.1} parent=1 // pred_check_branch
      %16 = sbr.rel (0) target = $region5
    $region4: #{tpu_custom_call.1} parent=1 // pred_region
      _
    $region5: #{tpu_custom_call.1} parent=1 // pred_fallthru
      _
    // Predicated region
    $region6: #{tpu_custom_call.1} parent=1 // pred_check
      _
    $region7: #{tpu_custom_call.1} parent=1 // pred_check_branch
      %18 = sbr.rel (0) target = $region9
    $region8: #{tpu_custom_call.1} parent=1 // pred_region
      _
    $region9: #{tpu_custom_call.1} parent=1 // pred_fallthru
      _
    // Predicated region
    $region10: #{tpu_custom_call.1} parent=1 // pred_check
      _
    $region11: #{tpu_custom_call.1} parent=1 // pred_check_branch
      %20 = sbr.rel (0) target = $region13
    $region12: #{tpu_custom_call.1} parent=1 // pred_region
      _
    $region13: #{tpu_custom_call.1} parent=1 // pred_fallthru
      _
    // Predicated region
    $region14: #{tpu_custom_call.1} parent=1 // pred_check
      _
    $region15: #{tpu_custom_call.1} parent=1 // pred_check_branch
      %22 = sbr.rel (0) target = $region17
    $region16: #{tpu_custom_call.1} parent=1 // pred_region
      _
    $region17: #{tpu_custom_call.1} parent=1 // pred_fallthru
      _
    // Predicated region
    $region18: #{tpu_custom_call.1} parent=1 // pred_check
      _
    $region19: #{tpu_custom_call.1} parent=1 // pred_check_branch
      %24 = sbr.rel (0) target = $region21
    $region20: #{tpu_custom_call.1} parent=1 // pred_region
      _
    $region21: #{tpu_custom_call.1} parent=1 // pred_fallthru
      _
    // Predicated region
    $region22: #{tpu_custom_call.1} parent=1 // pred_check
      _
    $region23: #{tpu_custom_call.1} parent=1 // pred_check_branch
      %26 = sbr.rel (0) target = $region25
    $region24: #{tpu_custom_call.1} parent=1 // pred_region
      _
    $region25: #{tpu_custom_call.1} parent=1 // pred_fallthru
      _
    // Predicated region
    $region26: #{tpu_custom_call.1} parent=1 // pred_check
      _
    $region27: #{tpu_custom_call.1} parent=1 // pred_check_branch
      %28 = sbr.rel (0) target = $region29
    $region28: #{tpu_custom_call.1} parent=1 // pred_region
      _
    $region29: #{tpu_custom_call.1} parent=1 // pred_fallthru
      _
    %v30 = vld [vmem:[%s0] sm:$0xf]
    %v31 = vld [vmem:[%s1] sm:$0xff]
    %v32 = vld [vmem:[%s1 + $0x8] sm:$0xff]
    %v33 = vld [vmem:[%s1 + $0x10] sm:$0xff]
    %v34 = vld [vmem:[%s1 + $0x18] sm:$0xff]
    %v35 = vld [vmem:[%s2] sm:$0x1]
    %v37 = vlaneseq
    %v38 = vshrl.u32 %v37, 7
    %v39 = vsub.s32 0, %v38
    %v40 = vrot.slane %v35, %v39
    %vm42 = vcmask 261120
    %v44 = vsel %vm42, %v30, 0
    %46 = vmatprep.subr.mxu0 0.0
    %47 = vmatpush1.msra.mxu0 %v31
    %48 = vmatprep.subr.mxu0 0.0
    %49 = vmatpush1.msra.mxu0 %v32
    %50 = vmatprep.subr.mxu0 0.0
    %51 = vmatpush1.msra.mxu0 %v33
    %52 = vmatprep.subr.mxu0 0.0
    %53 = vmatpush1.msra.mxu0 %v34
    %54 = vmatprep.subr.mxu0 0.0
    %55 = vmatpush1.msra.mxu0 0.0
    %56 = vmatprep.subr.mxu0 0.0
    %57 = vmatpush1.msra.mxu0 0.0
    %58 = vmatprep.subr.mxu0 0.0
    %59 = vmatpush1.msra.mxu0 0.0
    %60 = vmatprep.subr.mxu0 0.0
    %61 = vmatpush1.msra.mxu0 0.0
    %62 = vmatprep.subr.mxu0 0.0
    %63 = vmatpush1.msra.mxu0 0.0
    %64 = vmatprep.subr.mxu0 0.0
    %65 = vmatpush1.msra.mxu0 0.0
    %66 = vmatprep.subr.mxu0 0.0
    %67 = vmatpush1.msra.mxu0 0.0
    %68 = vmatprep.subr.mxu0 0.0
    %69 = vmatpush1.msra.mxu0 0.0
    %70 = vmatprep.subr.mxu0 0.0
    %71 = vmatpush1.msra.mxu0 0.0
    %72 = vmatprep.subr.mxu0 0.0
    %73 = vmatpush1.msra.mxu0 0.0
    %74 = vmatprep.subr.mxu0 0.0
    %75 = vmatpush1.msra.mxu0 0.0
    %76 = vmatprep.subr.mxu0 0.0
    %77 = vmatpush1.msra.mxu0 0.0
    %78 = vmatprep.subr.mxu0 0.0
    %79 = vmatpush1.msra.mxu0 0.0
    %80 = vmatprep.subr.mxu0 0.0
    %81 = vmatpush1.msra.mxu0 0.0
    %82 = vmatprep.subr.mxu0 0.0
    %83 = vmatpush1.msra.mxu0 0.0
    %84 = vmatprep.subr.mxu0 0.0
    %85 = vmatpush1.msra.mxu0 0.0
    %86 = vmatprep.subr.mxu0 0.0
    %87 = vmatpush1.msra.mxu0 0.0
    %88 = vmatprep.subr.mxu0 0.0
    %89 = vmatpush1.msra.mxu0 0.0
    %90 = vmatprep.subr.mxu0 0.0
    %91 = vmatpush1.msra.mxu0 0.0
    %92 = vmatprep.subr.mxu0 0.0
    %93 = vmatpush1.msra.mxu0 0.0
    %94 = vmatprep.subr.mxu0 0.0
    %95 = vmatpush1.msra.mxu0 0.0
    %96 = vmatprep.subr.mxu0 0.0
    %97 = vmatpush1.msra.mxu0 0.0
    %98 = vmatprep.subr.mxu0 0.0
    %99 = vmatpush1.msra.mxu0 0.0
    %100 = vmatprep.subr.mxu0 0.0
    %101 = vmatpush1.msra.mxu0 0.0
    %102 = vmatprep.subr.mxu0 0.0
    %103 = vmatpush1.msra.mxu0 0.0
    %104 = vmatprep.subr.mxu0 0.0
    %105 = vmatpush1.msra.mxu0 0.0
    %106 = vmatprep.subr.mxu0 0.0
    %107 = vmatpush1.msra.mxu0 0.0
    %108 = vmatprep.subr.mxu0 0.0
    %109 = vmatpush1.msra.mxu0 0.0
    %110 = vmatprep.mubr.bf16.mxu0 0
    %111 = vmatmul.mubr.bf16.gmra.mrb[0].mxu0 %v44
    %v112 = vpop.f32.mrb[0].mxu0
    %v113 = vadd.f32 %v40, %v112
    %v114 = vpop.f32.mrb[0].mxu0
    %v115 = vpop.f32.mrb[0].mxu0
    %v116 = vpop.f32.mrb[0].mxu0
    %117 = vdwg.mxu0
    %v118 = vmax.f32 %v113, 0.0
    %v119 = vld [vmem:[%s3] sm:$0xff]
    %v120 = vld [vmem:[%s3 + $0x8] sm:$0xff]
    %v121 = vld [vmem:[%s3 + $0x10] sm:$0xff]
    %v122 = vld [vmem:[%s3 + $0x18] sm:$0xff]
    %v123 = vld [vmem:[%s3 + $0x20] sm:$0xff]
    %v124 = vld [vmem:[%s3 + $0x28] sm:$0xff]
    %v125 = vld [vmem:[%s3 + $0x30] sm:$0xff]
    %v126 = vld [vmem:[%s3 + $0x38] sm:$0xff]
    %v127 = vld [vmem:[%s4] sm:$0x1]
    %v129 = vlaneseq
    %v130 = vshrl.u32 %v129, 7
    %v131 = vsub.s32 0, %v130
    %v132 = vrot.slane %v127, %v131
    %vm134 = vcmask 523264
    %v136 = vsel %vm134, %v118, 0
    %138 = vmatprep.subr.mxu0 0.0
    %139 = vmatpush1.msra.mxu0 %v119
    %140 = vmatprep.subr.mxu0 0.0
    %141 = vmatpush1.msra.mxu0 %v120
    %142 = vmatprep.subr.mxu0 0.0
    %143 = vmatpush1.msra.mxu0 %v121
    %144 = vmatprep.subr.mxu0 0.0
    %145 = vmatpush1.msra.mxu0 %v122
    %146 = vmatprep.subr.mxu0 0.0
    %147 = vmatpush1.msra.mxu0 %v123
    %148 = vmatprep.subr.mxu0 0.0
    %149 = vmatpush1.msra.mxu0 %v124
    %150 = vmatprep.subr.mxu0 0.0
    %151 = vmatpush1.msra.mxu0 %v125
    %152 = vmatprep.subr.mxu0 0.0
    %153 = vmatpush1.msra.mxu0 %v126
    %154 = vmatprep.subr.mxu0 0.0
    %155 = vmatpush1.msra.mxu0 0.0
    %156 = vmatprep.subr.mxu0 0.0
    %157 = vmatpush1.msra.mxu0 0.0
    %158 = vmatprep.subr.mxu0 0.0
    %159 = vmatpush1.msra.mxu0 0.0
    %160 = vmatprep.subr.mxu0 0.0
    %161 = vmatpush1.msra.mxu0 0.0
    %162 = vmatprep.subr.mxu0 0.0
    %163 = vmatpush1.msra.mxu0 0.0
    %164 = vmatprep.subr.mxu0 0.0
    %165 = vmatpush1.msra.mxu0 0.0
    %166 = vmatprep.subr.mxu0 0.0
    %167 = vmatpush1.msra.mxu0 0.0
    %168 = vmatprep.subr.mxu0 0.0
    %169 = vmatpush1.msra.mxu0 0.0
    %170 = vmatprep.subr.mxu0 0.0
    %171 = vmatpush1.msra.mxu0 0.0
    %172 = vmatprep.subr.mxu0 0.0
    %173 = vmatpush1.msra.mxu0 0.0
    %174 = vmatprep.subr.mxu0 0.0
    %175 = vmatpush1.msra.mxu0 0.0
    %176 = vmatprep.subr.mxu0 0.0
    %177 = vmatpush1.msra.mxu0 0.0
    %178 = vmatprep.subr.mxu0 0.0
    %179 = vmatpush1.msra.mxu0 0.0
    %180 = vmatprep.subr.mxu0 0.0
    %181 = vmatpush1.msra.mxu0 0.0
    %182 = vmatprep.subr.mxu0 0.0
    %183 = vmatpush1.msra.mxu0 0.0
    %184 = vmatprep.subr.mxu0 0.0
    %185 = vmatpush1.msra.mxu0 0.0
    %186 = vmatprep.subr.mxu0 0.0
    %187 = vmatpush1.msra.mxu0 0.0
    %188 = vmatprep.subr.mxu0 0.0
    %189 = vmatpush1.msra.mxu0 0.0
    %190 = vmatprep.subr.mxu0 0.0
    %191 = vmatpush1.msra.mxu0 0.0
    %192 = vmatprep.subr.mxu0 0.0
    %193 = vmatpush1.msra.mxu0 0.0
    %194 = vmatprep.subr.mxu0 0.0
    %195 = vmatpush1.msra.mxu0 0.0
    %196 = vmatprep.subr.mxu0 0.0
    %197 = vmatpush1.msra.mxu0 0.0
    %198 = vmatprep.subr.mxu0 0.0
    %199 = vmatpush1.msra.mxu0 0.0
    %200 = vmatprep.subr.mxu0 0.0
    %201 = vmatpush1.msra.mxu0 0.0
    %202 = vmatprep.mubr.f32.mxu0 0.0
    %203 = vmatmul.mubr.f32.gmra.mrb[0].mxu0 %v136
    %v204 = vpop.f32.mrb[0].mxu0
    %v205 = vadd.f32 %v132, %v204
    %v206 = vpop.f32.mrb[0].mxu0
    %207 = vdwg.mxu0
    %v208 = vmax.f32 %v205, 0.0
    %v209 = vld [vmem:[%s5] sm:$0x1]
    %v210 = vld [vmem:[#allocation2] sm:$0x1]
    %212 = vset.pattern.permute.xlu0 0
    %213 = vperm.xlu0 %212, %v210
    %v214 = vpop.permute.xlu0 %213
    %v216 = vlaneseq
    %v217 = vshrl.u32 %v216, 7
    %v218 = vsub.s32 0, %v217
    %v219 = vrot.slane %v214, %v218
    %v221 = vsel %vm42, %v209, 0
    %v224 = vsel %vm42, %v208, 0
    %226 = vmatprep.subr.mxu0 0.0
    %227 = vmatpush1.xpose.msra.mxu0 %v224
    %228 = vmatprep.subr.mxu0 0.0
    %229 = vmatpush1.xpose.msra.mxu0 0.0
    %230 = vmatprep.subr.mxu0 0.0
    %231 = vmatpush1.xpose.msra.mxu0 0.0
    %232 = vmatprep.subr.mxu0 0.0
    %233 = vmatpush1.xpose.msra.mxu0 0.0
    %234 = vmatprep.subr.mxu0 0.0
    %235 = vmatpush1.xpose.msra.mxu0 0.0
    %236 = vmatprep.subr.mxu0 0.0
    %237 = vmatpush1.xpose.msra.mxu0 0.0
    %238 = vmatprep.subr.mxu0 0.0
    %239 = vmatpush1.xpose.msra.mxu0 0.0
    %240 = vmatprep.subr.mxu0 0.0
    %241 = vmatpush1.xpose.msra.mxu0 0.0
    %242 = vmatprep.subr.mxu0 0.0
    %243 = vmatpush1.xpose.msra.mxu0 0.0
    %244 = vmatprep.subr.mxu0 0.0
    %245 = vmatpush1.xpose.msra.mxu0 0.0
    %246 = vmatprep.subr.mxu0 0.0
    %247 = vmatpush1.xpose.msra.mxu0 0.0
    %248 = vmatprep.subr.mxu0 0.0
    %249 = vmatpush1.xpose.msra.mxu0 0.0
    %250 = vmatprep.subr.mxu0 0.0
    %251 = vmatpush1.xpose.msra.mxu0 0.0
    %252 = vmatprep.subr.mxu0 0.0
    %253 = vmatpush1.xpose.msra.mxu0 0.0
    %254 = vmatprep.subr.mxu0 0.0
    %255 = vmatpush1.xpose.msra.mxu0 0.0
    %256 = vmatprep.subr.mxu0 0.0
    %257 = vmatpush1.xpose.msra.mxu0 0.0
    %258 = vmatprep.subr.mxu0 0.0
    %259 = vmatpush1.xpose.msra.mxu0 0.0
    %260 = vmatprep.subr.mxu0 0.0
    %261 = vmatpush1.xpose.msra.mxu0 0.0
    %262 = vmatprep.subr.mxu0 0.0
    %263 = vmatpush1.xpose.msra.mxu0 0.0
    %264 = vmatprep.subr.mxu0 0.0
    %265 = vmatpush1.xpose.msra.mxu0 0.0
    %266 = vmatprep.subr.mxu0 0.0
    %267 = vmatpush1.xpose.msra.mxu0 0.0
    %268 = vmatprep.subr.mxu0 0.0
    %269 = vmatpush1.xpose.msra.mxu0 0.0
    %270 = vmatprep.subr.mxu0 0.0
    %271 = vmatpush1.xpose.msra.mxu0 0.0
    %272 = vmatprep.subr.mxu0 0.0
    %273 = vmatpush1.xpose.msra.mxu0 0.0
    %274 = vmatprep.subr.mxu0 0.0
    %275 = vmatpush1.xpose.msra.mxu0 0.0
    %276 = vmatprep.subr.mxu0 0.0
    %277 = vmatpush1.xpose.msra.mxu0 0.0
    %278 = vmatprep.subr.mxu0 0.0
    %279 = vmatpush1.xpose.msra.mxu0 0.0
    %280 = vmatprep.subr.mxu0 0.0
    %281 = vmatpush1.xpose.msra.mxu0 0.0
    %282 = vmatprep.subr.mxu0 0.0
    %283 = vmatpush1.xpose.msra.mxu0 0.0
    %284 = vmatprep.subr.mxu0 0.0
    %285 = vmatpush1.xpose.msra.mxu0 0.0
    %286 = vmatprep.subr.mxu0 0.0
    %287 = vmatpush1.xpose.msra.mxu0 0.0
    %288 = vmatprep.subr.mxu0 0.0
    %289 = vmatpush1.xpose.msra.mxu0 0.0
    %290 = vmatprep.mubr.f32.mxu0 0.0
    %291 = vmatmul.mubr.f32.gmra.mrb[0].mxu0 %v221
    %v292 = vpop.f32.mrb[0].mxu0
    %v293 = vadd.f32 %v219, %v292
    %v294 = vpop.f32.mrb[0].mxu0
    %295 = vdwg.mxu0
    %v296 = vsub.f32 0.0, %v293
    %v297 = vmul.f32 %v296, 1.442695
    %v298 = vpow.pop %v297
    %v299 = vadd.f32 %v298, 1.0
    %v300 = vrcp.pop %v299
    %vm301 = vcmask 57344
    %302 = vst.msk [vmem:[#allocation3] sm:$0x1] %vm301, %v300
    // Predicated region
    $region30: #{tpu_custom_call.1} parent=1 // pred_check
      _
    $region31: #{tpu_custom_call.1} parent=1 // pred_check_branch
      %304 = sbr.rel (0) target = $region33
    $region32: #{tpu_custom_call.1} parent=1 // pred_region
      %s306 = ssub.s32 16, 16
      %307 = vsyncadd [#allocation4], %s306
      %s309 = sshll.u32 [#allocation3], 4
      %s310 = int_to_ptr.vmem [resolvable:$true] %s309
      %312 = dma.vmem_to_hbm [thread:$0]  %s310, 16, %s7, [#allocation4]
    $region33: #{tpu_custom_call.1} parent=1 // pred_fallthru
      _
    // Predicated region
    $region34: #{tpu_custom_call.1} parent=1 // pred_check
      _
    $region35: #{tpu_custom_call.1} parent=1 // pred_check_branch
      %314 = sbr.rel (0) target = $region37
    $region36: #{tpu_custom_call.1} parent=1 // pred_region
      %315 = dma.done [#allocation4], 16
    $region37: #{tpu_custom_call.1} parent=1 // pred_fallthru
      _
    %316 = vsyncpa [#allocation4], 1

</llo_original>
